<compile_context>
chip_gen: v7x
topology: tpu7x:2x2x1
jax: 0.10.0
libtpu: 0.0.40
codegen_flags: <defaults>
</compile_context>

<pallas_src>
import functools

import jax
import jax.numpy as jnp
from jax import lax
from jax.experimental import pallas as pl
from jax.experimental.pallas import tpu as pltpu


def _round_up(x, m):
    return -(-x // m) * m


def rnn_kernel(ud_ref, x0_ref, wih_ref, whh_ref, x_out_ref, h_ref, gi_ref, *, tt, tb):
    """One grid step = TT timesteps of the ReLU-RNN recurrence for one batch tile.

    ud_ref : (tt, tb, nin_pad)  cat(U, D) chunk (matmul dtype)
    x0_ref : (tb, nx_pad)       initial hidden state for this batch tile (f32)
    wih_ref: (nin_pad, nx_pad)  W_ih^T (resident, matmul dtype)
    whh_ref: (nx_pad, nx_pad)   W_hh^T (resident, matmul dtype)
    x_out_ref: (tt, tb, nx_pad) stacked hidden states for this chunk (f32)
    h_ref  : (tb, nx_pad)       VMEM scratch carrying h across time chunks (f32)
    gi_ref : (tt*tb, nx_pad)    VMEM scratch holding the chunk's input projection (f32)
    """
    # Re-initialize the carried hidden state at time-chunk 0 of EVERY batch tile.
    @pl.when(pl.program_id(1) == 0)
    def _():
        h_ref[...] = x0_ref[...]

    # Hoist the weight loads out of the unrolled recurrence loop (frees vld slots).
    wih = wih_ref[...]           # (nin_pad, nx_pad)
    whh = whh_ref[...]           # (nx_pad, nx_pad)
    mdt = whh.dtype
    nin_pad = wih.shape[0]

    # Input projection for the whole chunk: one big MXU matmul, off the serial path.
    ud_flat = ud_ref[...].reshape(tt * tb, nin_pad)     # merge leading dims (tb % 8 == 0)
    gi_ref[...] = jnp.dot(ud_flat, wih, preferred_element_type=jnp.float32)

    def body(i, h):
        row0 = pl.multiple_of(i * tb, tb)
        gi_i = gi_ref[pl.ds(row0, tb), :]               # (tb, nx_pad) f32
        # h @ W_hh^T on the MXU (bf16 operands, f32 accumulation), add projection,
        # ReLU on the VPU.  The carried h stays f32 (no drift from the carry).
        h_new = jnp.maximum(
            jnp.dot(h.astype(mdt), whh, preferred_element_type=jnp.float32) + gi_i,
            0.0,
        )
        x_out_ref[i] = h_new.astype(x_out_ref.dtype)
        return h_new

    # Partial unroll: enough for LLO scheduling visibility without blowing vregs
    # when tb / tt are scaled up.
    h_final = lax.fori_loop(0, tt, body, h_ref[...], unroll=min(tt, 8))
    h_ref[...] = h_final


def rnn_forward(x0, U, D, w_ih, w_hh, *, tt=None, matmul_dtype=jnp.bfloat16,
                vmem_budget_bytes=40 * 1024 * 1024):
    """Pallas ReLU-RNN forward.

    x0:(B,nx), U:(T,B,nu), D:(T,B,nd),
    w_ih:(nx, nu+nd), w_hh:(nx, nx)  (PyTorch RNNCell layout, bias=False).
    Returns X:(T,B,nx) f32, Y:(T,B) with Y[t] = X[t][:, -1].

    matmul_dtype=jnp.bfloat16 (default) uses bf16 MXU operands with f32 accumulation;
    pass jnp.float32 for bit-faithful f32 matmuls.
    """
    T, B, nu = U.shape
    nd = D.shape[-1]
    nx = x0.shape[-1]
    nin = nu + nd

    mdt = jnp.dtype(matmul_dtype)
    msz = mdt.itemsize

    # --- Hardware-aligned padding: lanes -> 128, sublanes -> 8.  Zero padding is exact
    #     for a bias-free ReLU RNN (padded rows / columns stay identically zero).
    nx_pad = _round_up(nx, 128)
    nin_pad = _round_up(nin, 128)
    tb = min(128, _round_up(B, 8))      # batch tile (cap to bound vreg pressure)
    b_pad = _round_up(B, tb)

    # --- Auto-size the time chunk against a conservative VMEM budget (fits v7x 64 MiB).
    if tt is None:
        per_tt = tb * (2 * nin_pad * msz + 2 * nx_pad * 4 + nx_pad * 4)   # ud(x2)+X(x2)+gi
        fixed = (2 * (nin_pad + nx_pad) * nx_pad * msz                     # weights (x2 bufs)
                 + 3 * tb * nx_pad * 4)                                    # x0 (x2) + h scratch
        tt_max = (vmem_budget_bytes - fixed) // max(per_tt, 1)
        tt = int(max(1, min(T, tt_max, 256)))
    t_pad = _round_up(T, tt)

    # --- Weights in PyTorch layout (y = x @ W^T): pre-transpose and pad once.
    wih_t = jnp.transpose(w_ih).astype(mdt)   # (nin, nx)
    whh_t = jnp.transpose(w_hh).astype(mdt)   # (nx, nx)
    wih_p = jnp.zeros((nin_pad, nx_pad), mdt).at[:nin, :nx].set(wih_t)
    whh_p = jnp.zeros((nx_pad, nx_pad), mdt).at[:nx, :nx].set(whh_t)

    # --- Inputs: concatenate u/d (tiny last dim), pad, stream in matmul dtype.
    ud = jnp.concatenate([U, D], axis=-1)     # (T, B, nin)
    ud_p = jnp.zeros((t_pad, b_pad, nin_pad), mdt).at[:T, :B, :nin].set(ud.astype(mdt))
    x0_p = jnp.zeros((b_pad, nx_pad), jnp.float32).at[:B, :nx].set(x0.astype(jnp.float32))

    # --- Explicit VMEM budget (above default scoped limit when chunks are scaled up).
    vmem_bytes = (2 * tt * tb * nin_pad * msz        # ud chunk, double-buffered
                  + 2 * tt * tb * nx_pad * 4         # X chunk, double-buffered
                  + 2 * nin_pad * nx_pad * msz       # W_ih^T
                  + 2 * nx_pad * nx_pad * msz        # W_hh^T
                  + 2 * tb * nx_pad * 4              # x0
                  + tb * nx_pad * 4                  # h scratch
                  + tt * tb * nx_pad * 4)            # gi scratch
    vmem_limit = int(min(110 << 20, max(vmem_bytes + (8 << 20), 32 << 20)))

    kernel = functools.partial(rnn_kernel, tt=tt, tb=tb)

    X_p = pl.pallas_call(
        kernel,
        out_shape=jax.ShapeDtypeStruct((t_pad, b_pad, nx_pad), jnp.float32),
        grid_spec=pltpu.PrefetchScalarGridSpec(
            num_scalar_prefetch=0,
            grid=(b_pad // tb, t_pad // tt),          # (batch tiles, time chunks)
            in_specs=[
                pl.BlockSpec((tt, tb, nin_pad), lambda bt, c: (c, bt, 0)),  # ud chunk
                pl.BlockSpec((tb, nx_pad), lambda bt, c: (bt, 0)),          # x0 tile
                pl.BlockSpec((nin_pad, nx_pad), lambda bt, c: (0, 0)),      # W_ih^T (resident)
                pl.BlockSpec((nx_pad, nx_pad), lambda bt, c: (0, 0)),       # W_hh^T (resident)
            ],
            out_specs=pl.BlockSpec((tt, tb, nx_pad), lambda bt, c: (c, bt, 0)),
            scratch_shapes=[
                pltpu.VMEM((tb, nx_pad), jnp.float32),        # carried hidden state
                pltpu.VMEM((tt * tb, nx_pad), jnp.float32),   # chunk input projection
            ],
        ),
        compiler_params=pltpu.CompilerParams(
            dimension_semantics=("parallel", "arbitrary"),    # batch parallel, time serial
            vmem_limit_bytes=vmem_limit,
        ),
    )(ud_p, x0_p, wih_p, whh_p)

    X = X_p[:T, :B, :nx]
    Y = X[:, :, -1]   # width-1 stream taken in the wrapper (no narrow kernel output)
    return X, Y


def rnn_reference(x0, U, D, w_ih, w_hh):
    """Pure-JAX reference matching torch.nn.RNNCell(nonlinearity='relu', bias=False)."""
    def step(h, ud):
        u, d = ud
        ins = jnp.concatenate([u, d], axis=1)
        h_new = jnp.maximum(ins @ w_ih.T + h @ w_hh.T, 0.0)
        return h_new, (h_new, h_new[:, -1])

    _, (X, Y) = lax.scan(step, x0, (U, D))
    return X, Y


if __name__ == "__main__":
    # Small shapes consistent with the module's forward.
    B, nx, nu, nd, T = 2, 32, 4, 4, 8

    key = jax.random.PRNGKey(0)
    k0, k1, k2, k3, k4 = jax.random.split(key, 5)

    # Parameter init mirroring PyTorch RNNCell: U(-1/sqrt(nx), 1/sqrt(nx)).
    bound = 1.0 / jnp.sqrt(jnp.float32(nx))
    w_ih = jax.random.uniform(k0, (nx, nu + nd), jnp.float32, -bound, bound)
    w_hh = jax.random.uniform(k1, (nx, nx), jnp.float32, -bound, bound)

    x0 = jax.random.normal(k2, (B, nx), jnp.float32)
    U = jax.random.normal(k3, (T, B, nu), jnp.float32)
    D = jax.random.normal(k4, (T, B, nd), jnp.float32)

    X_ref, Y_ref = rnn_reference(x0, U, D, w_ih, w_hh)

    # Exact f32-matmul path: tight tolerance.
    X32, Y32 = rnn_forward(x0, U, D, w_ih, w_hh, matmul_dtype=jnp.float32)
    X32 = jax.block_until_ready(X32)
    Y32 = jax.block_until_ready(Y32)
    assert X32.shape == (T, B, nx) and Y32.shape == (T, B)
    assert jnp.allclose(X32, X_ref, atol=1e-4, rtol=1e-4)
    assert jnp.allclose(Y32, Y_ref, atol=1e-4, rtol=1e-4)

    # Default performance path (bf16 MXU operands, f32 accumulation): bf16 tolerance.
    Xbf, Ybf = rnn_forward(x0, U, D, w_ih, w_hh)
    Xbf = jax.block_until_ready(Xbf)
    Ybf = jax.block_until_ready(Ybf)
    assert Xbf.shape == (T, B, nx) and Ybf.shape == (T, B)
    assert jnp.allclose(Xbf, X_ref, atol=1e-1, rtol=1e-1)
    assert jnp.allclose(Ybf, Y_ref, atol=1e-1, rtol=1e-1)

    print("KERNEL_OK")
</pallas_src>

<mosaic_0001>
module attributes {stable_mosaic.version = 11 : i64} {
  func.func @rnn_kernel(%arg0: i32, %arg1: i32, %arg2: memref<8x8x128xf32, #tpu.memory_space<vmem>>, %arg3: memref<8x128xf32, #tpu.memory_space<vmem>>, %arg4: memref<128x128xf32, #tpu.memory_space<vmem>>, %arg5: memref<128x128xf32, #tpu.memory_space<vmem>>, %arg6: memref<8x8x128xf32, #tpu.memory_space<vmem>>, %arg7: memref<8x128xf32, #tpu.memory_space<vmem>>, %arg8: memref<64x128xf32, #tpu.memory_space<vmem>>) attributes {dimension_semantics = [#tpu.dimension_semantics<parallel>, #tpu.dimension_semantics<arbitrary>], iteration_bounds = array<i64: 1, 1>, scalar_prefetch = 0 : i64, scratch_operands = 2 : i64, tpu.core_type = #tpu.core_type<tc>, window_params = [{transform_indices = @transform_0, window_bounds = array<i64: 8, 8, 128>}, {transform_indices = @transform_1, window_bounds = array<i64: 8, 128>}, {pipeline_mode = #tpu.pipeline_mode<synchronous>, transform_indices = @transform_2, window_bounds = array<i64: 128, 128>}, {pipeline_mode = #tpu.pipeline_mode<synchronous>, transform_indices = @transform_3, window_bounds = array<i64: 128, 128>}, {transform_indices = @transform_4, window_bounds = array<i64: 8, 8, 128>}]} {
    %c0_i32 = arith.constant 0 : i32
    %0 = arith.cmpi eq, %arg1, %c0_i32 : i32
    %1 = arith.extui %0 : i1 to i32
    %c0_i32_0 = arith.constant 0 : i32
    %2 = arith.cmpi ne, %1, %c0_i32_0 : i32
    scf.if %2 {
      %c0_62 = arith.constant 0 : index
      %c0_63 = arith.constant 0 : index
      %107 = vector.load %arg3[%c0_62, %c0_63] : memref<8x128xf32, #tpu.memory_space<vmem>>, vector<8x128xf32>
      %c0_64 = arith.constant 0 : index
      %c0_65 = arith.constant 0 : index
      %108 = vector.load %arg7[%c0_64, %c0_65] : memref<8x128xf32, #tpu.memory_space<vmem>>, vector<8x128xf32>
      tpu.vector_store %arg7[%c0_64, %c0_65], %107 {strides = array<i32>} : memref<8x128xf32, #tpu.memory_space<vmem>>, vector<8x128xf32>,
    } else {
    }
    %c0 = arith.constant 0 : index
    %c0_1 = arith.constant 0 : index
    %3 = vector.load %arg4[%c0, %c0_1] : memref<128x128xf32, #tpu.memory_space<vmem>>, vector<128x128xf32>
    %c0_2 = arith.constant 0 : index
    %c0_3 = arith.constant 0 : index
    %4 = vector.load %arg5[%c0_2, %c0_3] : memref<128x128xf32, #tpu.memory_space<vmem>>, vector<128x128xf32>
    %c0_4 = arith.constant 0 : index
    %c0_5 = arith.constant 0 : index
    %c0_6 = arith.constant 0 : index
    %5 = vector.load %arg2[%c0_4, %c0_5, %c0_6] : memref<8x8x128xf32, #tpu.memory_space<vmem>>, vector<8x8x128xf32>
    %6 = vector.shape_cast %5 : vector<8x8x128xf32> to vector<64x128xf32>
    %cst = arith.constant dense<0.000000e+00> : vector<64x128xf32>
    %7 = tpu.matmul %6, %3, %cst {dimension_numbers = #tpu.dot_dimension_numbers<[1], [0], [0], [1], [0, 0, 1, 1], [], []>} : vector<64x128xf32>, vector<128x128xf32>, vector<64x128xf32> -> vector<64x128xf32>
    %c0_7 = arith.constant 0 : index
    %c0_8 = arith.constant 0 : index
    %8 = vector.load %arg8[%c0_7, %c0_8] : memref<64x128xf32, #tpu.memory_space<vmem>>, vector<64x128xf32>
    tpu.vector_store %arg8[%c0_7, %c0_8], %7 {strides = array<i32>} : memref<64x128xf32, #tpu.memory_space<vmem>>, vector<64x128xf32>,
    %c0_9 = arith.constant 0 : index
    %c0_10 = arith.constant 0 : index
    %9 = vector.load %arg7[%c0_9, %c0_10] : memref<8x128xf32, #tpu.memory_space<vmem>>, vector<8x128xf32>
    %c0_i32_11 = arith.constant 0 : i32
    %c8_i32 = arith.constant 8 : i32
    %10 = arith.muli %c0_i32_11, %c8_i32 : i32
    %11 = tpu.assume_multiple %10, 8 : i32
    %12 = arith.index_cast %11 : i32 to index
    %c0_12 = arith.constant 0 : index
    %13 = vector.load %arg8[%12, %c0_12] : memref<64x128xf32, #tpu.memory_space<vmem>>, vector<8x128xf32>
    %cst_13 = arith.constant dense<0.000000e+00> : vector<8x128xf32>
    %14 = tpu.matmul %9, %4, %cst_13 {dimension_numbers = #tpu.dot_dimension_numbers<[1], [0], [0], [1], [0, 0, 1, 1], [], []>} : vector<8x128xf32>, vector<128x128xf32>, vector<8x128xf32> -> vector<8x128xf32>
    %15 = arith.addf %14, %13 : vector<8x128xf32>
    %cst_14 = arith.constant 0.000000e+00 : f32
    %16 = vector.broadcast %cst_14 : f32 to vector<8x128xf32>
    %17 = arith.maximumf %15, %16 : vector<8x128xf32>
    %18 = arith.index_cast %c0_i32_11 : i32 to index
    %c0_15 = arith.constant 0 : index
    %c0_16 = arith.constant 0 : index
    %19 = vector.load %arg6[%18, %c0_15, %c0_16] : memref<8x8x128xf32, #tpu.memory_space<vmem>>, vector<1x8x128xf32>
    %20 = vector.shape_cast %19 : vector<1x8x128xf32> to vector<8x128xf32>
    %21 = vector.shape_cast %17 : vector<8x128xf32> to vector<1x8x128xf32>
    tpu.vector_store %arg6[%18, %c0_15, %c0_16], %21 {strides = array<i32>} : memref<8x8x128xf32, #tpu.memory_space<vmem>>, vector<1x8x128xf32>,
    %c1_i32 = arith.constant 1 : i32
    %c8_i32_17 = arith.constant 8 : i32
    %22 = arith.muli %c1_i32, %c8_i32_17 : i32
    %23 = tpu.assume_multiple %22, 8 : i32
    %24 = arith.index_cast %23 : i32 to index
    %c0_18 = arith.constant 0 : index
    %25 = vector.load %arg8[%24, %c0_18] : memref<64x128xf32, #tpu.memory_space<vmem>>, vector<8x128xf32>
    %cst_19 = arith.constant dense<0.000000e+00> : vector<8x128xf32>
    %26 = tpu.matmul %17, %4, %cst_19 {dimension_numbers = #tpu.dot_dimension_numbers<[1], [0], [0], [1], [0, 0, 1, 1], [], []>} : vector<8x128xf32>, vector<128x128xf32>, vector<8x128xf32> -> vector<8x128xf32>
    %27 = arith.addf %26, %25 : vector<8x128xf32>
    %cst_20 = arith.constant 0.000000e+00 : f32
    %28 = vector.broadcast %cst_20 : f32 to vector<8x128xf32>
    %29 = arith.maximumf %27, %28 : vector<8x128xf32>
    %30 = arith.index_cast %c1_i32 : i32 to index
    %c0_21 = arith.constant 0 : index
    %c0_22 = arith.constant 0 : index
    %31 = vector.load %arg6[%30, %c0_21, %c0_22] : memref<8x8x128xf32, #tpu.memory_space<vmem>>, vector<1x8x128xf32>
    %32 = vector.shape_cast %31 : vector<1x8x128xf32> to vector<8x128xf32>
    %33 = vector.shape_cast %29 : vector<8x128xf32> to vector<1x8x128xf32>
    tpu.vector_store %arg6[%30, %c0_21, %c0_22], %33 {strides = array<i32>} : memref<8x8x128xf32, #tpu.memory_space<vmem>>, vector<1x8x128xf32>,
    %c2_i32 = arith.constant 2 : i32
    %c8_i32_23 = arith.constant 8 : i32
    %34 = arith.muli %c2_i32, %c8_i32_23 : i32
    %35 = tpu.assume_multiple %34, 8 : i32
    %36 = arith.index_cast %35 : i32 to index
    %c0_24 = arith.constant 0 : index
    %37 = vector.load %arg8[%36, %c0_24] : memref<64x128xf32, #tpu.memory_space<vmem>>, vector<8x128xf32>
    %cst_25 = arith.constant dense<0.000000e+00> : vector<8x128xf32>
    %38 = tpu.matmul %29, %4, %cst_25 {dimension_numbers = #tpu.dot_dimension_numbers<[1], [0], [0], [1], [0, 0, 1, 1], [], []>} : vector<8x128xf32>, vector<128x128xf32>, vector<8x128xf32> -> vector<8x128xf32>
    %39 = arith.addf %38, %37 : vector<8x128xf32>
    %cst_26 = arith.constant 0.000000e+00 : f32
    %40 = vector.broadcast %cst_26 : f32 to vector<8x128xf32>
    %41 = arith.maximumf %39, %40 : vector<8x128xf32>
    %42 = arith.index_cast %c2_i32 : i32 to index
    %c0_27 = arith.constant 0 : index
    %c0_28 = arith.constant 0 : index
    %43 = vector.load %arg6[%42, %c0_27, %c0_28] : memref<8x8x128xf32, #tpu.memory_space<vmem>>, vector<1x8x128xf32>
    %44 = vector.shape_cast %43 : vector<1x8x128xf32> to vector<8x128xf32>
    %45 = vector.shape_cast %41 : vector<8x128xf32> to vector<1x8x128xf32>
    tpu.vector_store %arg6[%42, %c0_27, %c0_28], %45 {strides = array<i32>} : memref<8x8x128xf32, #tpu.memory_space<vmem>>, vector<1x8x128xf32>,
    %c3_i32 = arith.constant 3 : i32
    %c8_i32_29 = arith.constant 8 : i32
    %46 = arith.muli %c3_i32, %c8_i32_29 : i32
    %47 = tpu.assume_multiple %46, 8 : i32
    %48 = arith.index_cast %47 : i32 to index
    %c0_30 = arith.constant 0 : index
    %49 = vector.load %arg8[%48, %c0_30] : memref<64x128xf32, #tpu.memory_space<vmem>>, vector<8x128xf32>
    %cst_31 = arith.constant dense<0.000000e+00> : vector<8x128xf32>
    %50 = tpu.matmul %41, %4, %cst_31 {dimension_numbers = #tpu.dot_dimension_numbers<[1], [0], [0], [1], [0, 0, 1, 1], [], []>} : vector<8x128xf32>, vector<128x128xf32>, vector<8x128xf32> -> vector<8x128xf32>
    %51 = arith.addf %50, %49 : vector<8x128xf32>
    %cst_32 = arith.constant 0.000000e+00 : f32
    %52 = vector.broadcast %cst_32 : f32 to vector<8x128xf32>
    %53 = arith.maximumf %51, %52 : vector<8x128xf32>
    %54 = arith.index_cast %c3_i32 : i32 to index
    %c0_33 = arith.constant 0 : index
    %c0_34 = arith.constant 0 : index
    %55 = vector.load %arg6[%54, %c0_33, %c0_34] : memref<8x8x128xf32, #tpu.memory_space<vmem>>, vector<1x8x128xf32>
    %56 = vector.shape_cast %55 : vector<1x8x128xf32> to vector<8x128xf32>
    %57 = vector.shape_cast %53 : vector<8x128xf32> to vector<1x8x128xf32>
    tpu.vector_store %arg6[%54, %c0_33, %c0_34], %57 {strides = array<i32>} : memref<8x8x128xf32, #tpu.memory_space<vmem>>, vector<1x8x128xf32>,
    %c4_i32 = arith.constant 4 : i32
    %c8_i32_35 = arith.constant 8 : i32
    %58 = arith.muli %c4_i32, %c8_i32_35 : i32
    %59 = tpu.assume_multiple %58, 8 : i32
    %60 = arith.index_cast %59 : i32 to index
    %c0_36 = arith.constant 0 : index
    %61 = vector.load %arg8[%60, %c0_36] : memref<64x128xf32, #tpu.memory_space<vmem>>, vector<8x128xf32>
    %cst_37 = arith.constant dense<0.000000e+00> : vector<8x128xf32>
    %62 = tpu.matmul %53, %4, %cst_37 {dimension_numbers = #tpu.dot_dimension_numbers<[1], [0], [0], [1], [0, 0, 1, 1], [], []>} : vector<8x128xf32>, vector<128x128xf32>, vector<8x128xf32> -> vector<8x128xf32>
    %63 = arith.addf %62, %61 : vector<8x128xf32>
    %cst_38 = arith.constant 0.000000e+00 : f32
    %64 = vector.broadcast %cst_38 : f32 to vector<8x128xf32>
    %65 = arith.maximumf %63, %64 : vector<8x128xf32>
    %66 = arith.index_cast %c4_i32 : i32 to index
    %c0_39 = arith.constant 0 : index
    %c0_40 = arith.constant 0 : index
    %67 = vector.load %arg6[%66, %c0_39, %c0_40] : memref<8x8x128xf32, #tpu.memory_space<vmem>>, vector<1x8x128xf32>
    %68 = vector.shape_cast %67 : vector<1x8x128xf32> to vector<8x128xf32>
    %69 = vector.shape_cast %65 : vector<8x128xf32> to vector<1x8x128xf32>
    tpu.vector_store %arg6[%66, %c0_39, %c0_40], %69 {strides = array<i32>} : memref<8x8x128xf32, #tpu.memory_space<vmem>>, vector<1x8x128xf32>,
    %c5_i32 = arith.constant 5 : i32
    %c8_i32_41 = arith.constant 8 : i32
    %70 = arith.muli %c5_i32, %c8_i32_41 : i32
    %71 = tpu.assume_multiple %70, 8 : i32
    %72 = arith.index_cast %71 : i32 to index
    %c0_42 = arith.constant 0 : index
    %73 = vector.load %arg8[%72, %c0_42] : memref<64x128xf32, #tpu.memory_space<vmem>>, vector<8x128xf32>
    %cst_43 = arith.constant dense<0.000000e+00> : vector<8x128xf32>
    %74 = tpu.matmul %65, %4, %cst_43 {dimension_numbers = #tpu.dot_dimension_numbers<[1], [0], [0], [1], [0, 0, 1, 1], [], []>} : vector<8x128xf32>, vector<128x128xf32>, vector<8x128xf32> -> vector<8x128xf32>
    %75 = arith.addf %74, %73 : vector<8x128xf32>
    %cst_44 = arith.constant 0.000000e+00 : f32
    %76 = vector.broadcast %cst_44 : f32 to vector<8x128xf32>
    %77 = arith.maximumf %75, %76 : vector<8x128xf32>
    %78 = arith.index_cast %c5_i32 : i32 to index
    %c0_45 = arith.constant 0 : index
    %c0_46 = arith.constant 0 : index
    %79 = vector.load %arg6[%78, %c0_45, %c0_46] : memref<8x8x128xf32, #tpu.memory_space<vmem>>, vector<1x8x128xf32>
    %80 = vector.shape_cast %79 : vector<1x8x128xf32> to vector<8x128xf32>
    %81 = vector.shape_cast %77 : vector<8x128xf32> to vector<1x8x128xf32>
    tpu.vector_store %arg6[%78, %c0_45, %c0_46], %81 {strides = array<i32>} : memref<8x8x128xf32, #tpu.memory_space<vmem>>, vector<1x8x128xf32>,
    %c6_i32 = arith.constant 6 : i32
    %c8_i32_47 = arith.constant 8 : i32
    %82 = arith.muli %c6_i32, %c8_i32_47 : i32
    %83 = tpu.assume_multiple %82, 8 : i32
    %84 = arith.index_cast %83 : i32 to index
    %c0_48 = arith.constant 0 : index
    %85 = vector.load %arg8[%84, %c0_48] : memref<64x128xf32, #tpu.memory_space<vmem>>, vector<8x128xf32>
    %cst_49 = arith.constant dense<0.000000e+00> : vector<8x128xf32>
    %86 = tpu.matmul %77, %4, %cst_49 {dimension_numbers = #tpu.dot_dimension_numbers<[1], [0], [0], [1], [0, 0, 1, 1], [], []>} : vector<8x128xf32>, vector<128x128xf32>, vector<8x128xf32> -> vector<8x128xf32>
    %87 = arith.addf %86, %85 : vector<8x128xf32>
    %cst_50 = arith.constant 0.000000e+00 : f32
    %88 = vector.broadcast %cst_50 : f32 to vector<8x128xf32>
    %89 = arith.maximumf %87, %88 : vector<8x128xf32>
    %90 = arith.index_cast %c6_i32 : i32 to index
    %c0_51 = arith.constant 0 : index
    %c0_52 = arith.constant 0 : index
    %91 = vector.load %arg6[%90, %c0_51, %c0_52] : memref<8x8x128xf32, #tpu.memory_space<vmem>>, vector<1x8x128xf32>
    %92 = vector.shape_cast %91 : vector<1x8x128xf32> to vector<8x128xf32>
    %93 = vector.shape_cast %89 : vector<8x128xf32> to vector<1x8x128xf32>
    tpu.vector_store %arg6[%90, %c0_51, %c0_52], %93 {strides = array<i32>} : memref<8x8x128xf32, #tpu.memory_space<vmem>>, vector<1x8x128xf32>,
    %c7_i32 = arith.constant 7 : i32
    %c8_i32_53 = arith.constant 8 : i32
    %94 = arith.muli %c7_i32, %c8_i32_53 : i32
    %95 = tpu.assume_multiple %94, 8 : i32
    %96 = arith.index_cast %95 : i32 to index
    %c0_54 = arith.constant 0 : index
    %97 = vector.load %arg8[%96, %c0_54] : memref<64x128xf32, #tpu.memory_space<vmem>>, vector<8x128xf32>
    %cst_55 = arith.constant dense<0.000000e+00> : vector<8x128xf32>
    %98 = tpu.matmul %89, %4, %cst_55 {dimension_numbers = #tpu.dot_dimension_numbers<[1], [0], [0], [1], [0, 0, 1, 1], [], []>} : vector<8x128xf32>, vector<128x128xf32>, vector<8x128xf32> -> vector<8x128xf32>
    %99 = arith.addf %98, %97 : vector<8x128xf32>
    %cst_56 = arith.constant 0.000000e+00 : f32
    %100 = vector.broadcast %cst_56 : f32 to vector<8x128xf32>
    %101 = arith.maximumf %99, %100 : vector<8x128xf32>
    %102 = arith.index_cast %c7_i32 : i32 to index
    %c0_57 = arith.constant 0 : index
    %c0_58 = arith.constant 0 : index
    %103 = vector.load %arg6[%102, %c0_57, %c0_58] : memref<8x8x128xf32, #tpu.memory_space<vmem>>, vector<1x8x128xf32>
    %104 = vector.shape_cast %103 : vector<1x8x128xf32> to vector<8x128xf32>
    %105 = vector.shape_cast %101 : vector<8x128xf32> to vector<1x8x128xf32>
    tpu.vector_store %arg6[%102, %c0_57, %c0_58], %105 {strides = array<i32>} : memref<8x8x128xf32, #tpu.memory_space<vmem>>, vector<1x8x128xf32>,
    %c8_i32_59 = arith.constant 8 : i32
    %c0_60 = arith.constant 0 : index
    %c0_61 = arith.constant 0 : index
    %106 = vector.load %arg7[%c0_60, %c0_61] : memref<8x128xf32, #tpu.memory_space<vmem>>, vector<8x128xf32>
    tpu.vector_store %arg7[%c0_60, %c0_61], %101 {strides = array<i32>} : memref<8x128xf32, #tpu.memory_space<vmem>>, vector<8x128xf32>,
    return
  }
  func.func @transform_0(%arg0: i32, %arg1: i32) -> (i32, i32, i32) {
    %c0_i32 = arith.constant 0 : i32
    %c0_i32_0 = arith.constant 0 : i32
    return %arg1, %arg0, %c0_i32 : i32, i32, i32
  }
  func.func @transform_1(%arg0: i32, %arg1: i32) -> (i32, i32) {
    %c0_i32 = arith.constant 0 : i32
    %c0_i32_0 = arith.constant 0 : i32
    return %arg0, %c0_i32 : i32, i32
  }
  func.func @transform_2(%arg0: i32, %arg1: i32) -> (i32, i32) {
    %c0_i32 = arith.constant 0 : i32
    %c0_i32_0 = arith.constant 0 : i32
    %c0_i32_1 = arith.constant 0 : i32
    return %c0_i32, %c0_i32_0 : i32, i32
  }
  func.func @transform_3(%arg0: i32, %arg1: i32) -> (i32, i32) {
    %c0_i32 = arith.constant 0 : i32
    %c0_i32_0 = arith.constant 0 : i32
    %c0_i32_1 = arith.constant 0 : i32
    return %c0_i32, %c0_i32_0 : i32, i32
  }
  func.func @transform_4(%arg0: i32, %arg1: i32) -> (i32, i32, i32) {
    %c0_i32 = arith.constant 0 : i32
    %c0_i32_0 = arith.constant 0 : i32
    return %arg1, %arg0, %c0_i32 : i32, i32, i32
  }
}

</mosaic_0001>

<llo_original>
// kernel: tpu_custom_call.1
$region0: #{tpu_custom_call.1}
  #allocation0 [shape = 'u32[]', space=smem, size = 0x4, offset = 0x4, fixed_abs, tag = 'smem constant byte address 0x4 - core index']
  #allocation1 [shape = 'u32[144,128]{1,0:T(1,128)}', space=vmem, size = 0x12000, scoped, tag = 'internal scratch']
  #allocation2 [shape = 'f32[8,128]{1,0:T(8,128)}', space=vmem, size = 0x1000, scoped, tag = 'scratch operand']
  #allocation3 [shape = 'f32[64,128]{1,0:T(8,128)}', space=vmem, size = 0x8000, scoped, tag = 'scratch operand']
  %s0 = inlined_call_operand.hbm [shape: f32[8,8,128], index: 0, kind: input, shape index: {}]
  %s1 = inlined_call_operand.hbm [shape: f32[8,128], index: 1, kind: input, shape index: {}]
  %s2 = inlined_call_operand.hbm [shape: f32[128,128], index: 2, kind: input, shape index: {}]
  %s3 = inlined_call_operand.hbm [shape: f32[128,128], index: 3, kind: input, shape index: {}]
  %s4 = inlined_call_operand.hbm [shape: f32[8,8,128], index: 4, kind: output, shape index: {}]
  %s5 = sld [smem:[#allocation0]]
  $region46: #{tpu_custom_call.1} parent=0
    _
  %s7 = ssub.s32 1, %s5
  %s8 = scalar_select 0, %s7, %s5
  $region1: #{tpu_custom_call.1} parent=0
    #allocation4 [shape = 'u8[32768]{0}', space=vmem, size = 0x8000, scoped, tag = 'input window, operand 0, single buffered']
    #allocation5 [shape = 's32[1]{0}', space=sflag, size = 0x4, scoped, tag = 'scoped memory for tpu_custom_call.1']
    #allocation6 [shape = 's32[1]{0}', space=sflag, size = 0x4, scoped, tag = 'scoped memory for tpu_custom_call.1']
    #allocation7 [shape = 'u8[4096]{0}', space=vmem, size = 0x1000, scoped, tag = 'input window, operand 1, single buffered']
    #allocation8 [shape = 's32[1]{0}', space=sflag, size = 0x4, scoped, tag = 'scoped memory for tpu_custom_call.1']
    #allocation9 [shape = 'u8[65536]{0}', space=vmem, size = 0x10000, scoped, tag = 'input window, operand 2, single buffered']
    #allocation10 [shape = 'u8[65536]{0}', space=vmem, size = 0x10000, scoped, tag = 'input window, operand 3, single buffered']
    #allocation11 [shape = 's32[1]{0}', space=sflag, size = 0x4, scoped, tag = 'scoped memory for tpu_custom_call.1']
    #allocation12 [shape = 'u8[32768]{0}', space=vmem, size = 0x8000, scoped, tag = 'output window, operand 0, single buffered']
    %9 = vsyncpa [#allocation5], 0
    %10 = vsyncpa [#allocation8], 0
    %11 = vsyncpa [#allocation11], 0
    %12 = vsyncpa [#allocation6], 0
    // Predicated region
    $region2: #{tpu_custom_call.1} parent=1 // pred_check
      _
    $region3: #{tpu_custom_call.1} parent=1 // pred_check_branch
      %14 = sbr.rel (0) target = $region5
    $region4: #{tpu_custom_call.1} parent=1 // pred_region
      %s16 = ssub.s32 1024, 1024
      %17 = vsyncadd [#allocation5], %s16
      %s18 = sshll.u32 [#allocation4], 4
      %s19 = int_to_ptr.vmem [resolvable:$true] %s18
      %24 = dma.hbm_to_vmem [thread:$0]  %s0, 1024, %s19, [#allocation5], 128, 128, 8
    $region5: #{tpu_custom_call.1} parent=1 // pred_fallthru
      _
    // Predicated region
    $region6: #{tpu_custom_call.1} parent=1 // pred_check
      _
    $region7: #{tpu_custom_call.1} parent=1 // pred_check_branch
      %26 = sbr.rel (0) target = $region9
    $region8: #{tpu_custom_call.1} parent=1 // pred_region
      %s28 = ssub.s32 128, 128
      %29 = vsyncadd [#allocation8], %s28
      %s31 = sshll.u32 [#allocation7], 4
      %s32 = int_to_ptr.vmem [resolvable:$true] %s31
      %34 = dma.hbm_to_vmem [thread:$0]  %s1, 128, %s32, [#allocation8]
    $region9: #{tpu_custom_call.1} parent=1 // pred_fallthru
      _
    // Predicated region
    $region10: #{tpu_custom_call.1} parent=1 // pred_check
      _
    $region11: #{tpu_custom_call.1} parent=1 // pred_check_branch
      %36 = sbr.rel (0) target = $region13
    $region12: #{tpu_custom_call.1} parent=1 // pred_region
      %s38 = ssub.s32 2048, 2048
      %39 = vsyncadd [#allocation8], %s38
      %s40 = sshll.u32 [#allocation9], 4
      %s41 = int_to_ptr.vmem [resolvable:$true] %s40
      %46 = dma.hbm_to_vmem [thread:$0]  %s2, 2048, %s41, [#allocation8], 128, 128, 8
    $region13: #{tpu_custom_call.1} parent=1 // pred_fallthru
      _
    // Predicated region
    $region14: #{tpu_custom_call.1} parent=1 // pred_check
      _
    $region15: #{tpu_custom_call.1} parent=1 // pred_check_branch
      %48 = sbr.rel (0) target = $region17
    $region16: #{tpu_custom_call.1} parent=1 // pred_region
      %s50 = ssub.s32 2048, 2048
      %51 = vsyncadd [#allocation11], %s50
      %s52 = sshll.u32 [#allocation10], 4
      %s53 = int_to_ptr.vmem [resolvable:$true] %s52
      %58 = dma.hbm_to_vmem [thread:$0]  %s3, 2048, %s53, [#allocation11], 128, 128, 8
    $region17: #{tpu_custom_call.1} parent=1 // pred_fallthru
      _
    // Predicated region
    $region18: #{tpu_custom_call.1} parent=1 // pred_check
      _
    $region19: #{tpu_custom_call.1} parent=1 // pred_check_branch
      %60 = sbr.rel (0) target = $region21
    $region20: #{tpu_custom_call.1} parent=1 // pred_region
      %61 = dma.done [#allocation5], 1024
    $region21: #{tpu_custom_call.1} parent=1 // pred_fallthru
      _
    // Predicated region
    $region22: #{tpu_custom_call.1} parent=1 // pred_check
      _
    $region23: #{tpu_custom_call.1} parent=1 // pred_check_branch
      %63 = sbr.rel (0) target = $region25
    $region24: #{tpu_custom_call.1} parent=1 // pred_region
      %64 = dma.done [#allocation8], 128
    $region25: #{tpu_custom_call.1} parent=1 // pred_fallthru
      _
    // Predicated region
    $region26: #{tpu_custom_call.1} parent=1 // pred_check
      _
    $region27: #{tpu_custom_call.1} parent=1 // pred_check_branch
      %66 = sbr.rel (0) target = $region29
    $region28: #{tpu_custom_call.1} parent=1 // pred_region
      %67 = dma.done [#allocation8], 2048
    $region29: #{tpu_custom_call.1} parent=1 // pred_fallthru
      _
    // Predicated region
    $region30: #{tpu_custom_call.1} parent=1 // pred_check
      _
    $region31: #{tpu_custom_call.1} parent=1 // pred_check_branch
      %69 = sbr.rel (0) target = $region33
    $region32: #{tpu_custom_call.1} parent=1 // pred_region
      %70 = dma.done [#allocation11], 2048
    $region33: #{tpu_custom_call.1} parent=1 // pred_fallthru
      _
    %p71 = scmp.eq.s32.totalorder 0, 0
    // Predicated region
    $region34: #{tpu_custom_call.1} parent=1 // pred_check
      %p72 = pneg %p71
    $region35: #{tpu_custom_call.1} parent=1 // pred_check_branch
      %74 = sbr.rel (%p72) target = $region37
    $region36: #{tpu_custom_call.1} parent=1 // pred_region
      %v75 = vld [vmem:[#allocation7] sm:$0xff]
      %76 = vst [vmem:[#allocation2] sm:$0xff] %v75
    $region37: #{tpu_custom_call.1} parent=1 // pred_fallthru
      _
    %v77 = vld [vmem:[#allocation9] sm:$0xff]
    %v78 = vld [vmem:[#allocation9 + $0x8] sm:$0xff]
    %v79 = vld [vmem:[#allocation9 + $0x10] sm:$0xff]
    %v80 = vld [vmem:[#allocation9 + $0x18] sm:$0xff]
    %v81 = vld [vmem:[#allocation9 + $0x20] sm:$0xff]
    %v82 = vld [vmem:[#allocation9 + $0x28] sm:$0xff]
    %v83 = vld [vmem:[#allocation9 + $0x30] sm:$0xff]
    %v84 = vld [vmem:[#allocation9 + $0x38] sm:$0xff]
    %v85 = vld [vmem:[#allocation9 + $0x40] sm:$0xff]
    %v86 = vld [vmem:[#allocation9 + $0x48] sm:$0xff]
    %v87 = vld [vmem:[#allocation9 + $0x50] sm:$0xff]
    %v88 = vld [vmem:[#allocation9 + $0x58] sm:$0xff]
    %v89 = vld [vmem:[#allocation9 + $0x60] sm:$0xff]
    %v90 = vld [vmem:[#allocation9 + $0x68] sm:$0xff]
    %v91 = vld [vmem:[#allocation9 + $0x70] sm:$0xff]
    %v92 = vld [vmem:[#allocation9 + $0x78] sm:$0xff]
    %v93 = vld [vmem:[#allocation10] sm:$0xff]
    %v94 = vld [vmem:[#allocation10 + $0x8] sm:$0xff]
    %v95 = vld [vmem:[#allocation10 + $0x10] sm:$0xff]
    %v96 = vld [vmem:[#allocation10 + $0x18] sm:$0xff]
    %v97 = vld [vmem:[#allocation10 + $0x20] sm:$0xff]
    %v98 = vld [vmem:[#allocation10 + $0x28] sm:$0xff]
    %v99 = vld [vmem:[#allocation10 + $0x30] sm:$0xff]
    %v100 = vld [vmem:[#allocation10 + $0x38] sm:$0xff]
    %v101 = vld [vmem:[#allocation10 + $0x40] sm:$0xff]
    %v102 = vld [vmem:[#allocation10 + $0x48] sm:$0xff]
    %v103 = vld [vmem:[#allocation10 + $0x50] sm:$0xff]
    %v104 = vld [vmem:[#allocation10 + $0x58] sm:$0xff]
    %v105 = vld [vmem:[#allocation10 + $0x60] sm:$0xff]
    %v106 = vld [vmem:[#allocation10 + $0x68] sm:$0xff]
    %v107 = vld [vmem:[#allocation10 + $0x70] sm:$0xff]
    %v108 = vld [vmem:[#allocation10 + $0x78] sm:$0xff]
    %v109 = vld [vmem:[#allocation4] sm:$0xff]
    %v110 = vld [vmem:[#allocation4 + $0x8] sm:$0xff]
    %v111 = vld [vmem:[#allocation4 + $0x10] sm:$0xff]
    %v112 = vld [vmem:[#allocation4 + $0x18] sm:$0xff]
    %v113 = vld [vmem:[#allocation4 + $0x20] sm:$0xff]
    %v114 = vld [vmem:[#allocation4 + $0x28] sm:$0xff]
    %v115 = vld [vmem:[#allocation4 + $0x30] sm:$0xff]
    %v116 = vld [vmem:[#allocation4 + $0x38] sm:$0xff]
    %117 = vmatprep.subr.mxu0 0.0
    %118 = vmatpush1.msra.mxu0 %v77
    %119 = vmatprep.subr.mxu0 0.0
    %120 = vmatpush1.msra.mxu0 %v78
    %121 = vmatprep.subr.mxu0 0.0
    %122 = vmatpush1.msra.mxu0 %v79
    %123 = vmatprep.subr.mxu0 0.0
    %124 = vmatpush1.msra.mxu0 %v80
    %125 = vmatprep.subr.mxu0 0.0
    %126 = vmatpush1.msra.mxu0 %v81
    %127 = vmatprep.subr.mxu0 0.0
    %128 = vmatpush1.msra.mxu0 %v82
    %129 = vmatprep.subr.mxu0 0.0
    %130 = vmatpush1.msra.mxu0 %v83
    %131 = vmatprep.subr.mxu0 0.0
    %132 = vmatpush1.msra.mxu0 %v84
    %133 = vmatprep.subr.mxu0 0.0
    %134 = vmatpush1.msra.mxu0 %v85
    %135 = vmatprep.subr.mxu0 0.0
    %136 = vmatpush1.msra.mxu0 %v86
    %137 = vmatprep.subr.mxu0 0.0
    %138 = vmatpush1.msra.mxu0 %v87
    %139 = vmatprep.subr.mxu0 0.0
    %140 = vmatpush1.msra.mxu0 %v88
    %141 = vmatprep.subr.mxu0 0.0
    %142 = vmatpush1.msra.mxu0 %v89
    %143 = vmatprep.subr.mxu0 0.0
    %144 = vmatpush1.msra.mxu0 %v90
    %145 = vmatprep.subr.mxu0 0.0
    %146 = vmatpush1.msra.mxu0 %v91
    %147 = vmatprep.subr.mxu0 0.0
    %148 = vmatpush1.msra.mxu0 %v92
    %149 = vmatprep.subr.mxu0 0.0
    %150 = vmatpush1.msra.mxu0 0.0
    %151 = vmatprep.subr.mxu0 0.0
    %152 = vmatpush1.msra.mxu0 0.0
    %153 = vmatprep.subr.mxu0 0.0
    %154 = vmatpush1.msra.mxu0 0.0
    %155 = vmatprep.subr.mxu0 0.0
    %156 = vmatpush1.msra.mxu0 0.0
    %157 = vmatprep.subr.mxu0 0.0
    %158 = vmatpush1.msra.mxu0 0.0
    %159 = vmatprep.subr.mxu0 0.0
    %160 = vmatpush1.msra.mxu0 0.0
    %161 = vmatprep.subr.mxu0 0.0
    %162 = vmatpush1.msra.mxu0 0.0
    %163 = vmatprep.subr.mxu0 0.0
    %164 = vmatpush1.msra.mxu0 0.0
    %165 = vmatprep.subr.mxu0 0.0
    %166 = vmatpush1.msra.mxu0 0.0
    %167 = vmatprep.subr.mxu0 0.0
    %168 = vmatpush1.msra.mxu0 0.0
    %169 = vmatprep.subr.mxu0 0.0
    %170 = vmatpush1.msra.mxu0 0.0
    %171 = vmatprep.subr.mxu0 0.0
    %172 = vmatpush1.msra.mxu0 0.0
    %173 = vmatprep.subr.mxu0 0.0
    %174 = vmatpush1.msra.mxu0 0.0
    %175 = vmatprep.subr.mxu0 0.0
    %176 = vmatpush1.msra.mxu0 0.0
    %177 = vmatprep.subr.mxu0 0.0
    %178 = vmatpush1.msra.mxu0 0.0
    %179 = vmatprep.subr.mxu0 0.0
    %180 = vmatpush1.msra.mxu0 0.0
    %181 = vmatprep.mubr.f32.mxu0 0.0
    %182 = vmatmul.mubr.f32.gmra.mrb[0].mxu0 %v109
    %v183 = vpop.f32.mrb[0].mxu0
    %v184 = vadd.f32 0.0, %v183
    %v185 = vpop.f32.mrb[0].mxu0
    %186 = vmatprep.mubr.f32.mxu0 0.0
    %187 = vmatmul.mubr.f32.gmra.mrb[0].mxu0 %v110
    %v188 = vpop.f32.mrb[0].mxu0
    %v189 = vadd.f32 0.0, %v188
    %v190 = vpop.f32.mrb[0].mxu0
    %191 = vmatprep.mubr.f32.mxu0 0.0
    %192 = vmatmul.mubr.f32.gmra.mrb[0].mxu0 %v111
    %v193 = vpop.f32.mrb[0].mxu0
    %v194 = vadd.f32 0.0, %v193
    %v195 = vpop.f32.mrb[0].mxu0
    %196 = vmatprep.mubr.f32.mxu0 0.0
    %197 = vmatmul.mubr.f32.gmra.mrb[0].mxu0 %v112
    %v198 = vpop.f32.mrb[0].mxu0
    %v199 = vadd.f32 0.0, %v198
    %v200 = vpop.f32.mrb[0].mxu0
    %201 = vmatprep.mubr.f32.mxu0 0.0
    %202 = vmatmul.mubr.f32.gmra.mrb[0].mxu0 %v113
    %v203 = vpop.f32.mrb[0].mxu0
    %v204 = vadd.f32 0.0, %v203
    %v205 = vpop.f32.mrb[0].mxu0
    %206 = vmatprep.mubr.f32.mxu0 0.0
    %207 = vmatmul.mubr.f32.gmra.mrb[0].mxu0 %v114
    %v208 = vpop.f32.mrb[0].mxu0
    %v209 = vadd.f32 0.0, %v208
    %v210 = vpop.f32.mrb[0].mxu0
    %211 = vmatprep.mubr.f32.mxu0 0.0
    %212 = vmatmul.mubr.f32.gmra.mrb[0].mxu0 %v115
    %v213 = vpop.f32.mrb[0].mxu0
    %v214 = vadd.f32 0.0, %v213
    %v215 = vpop.f32.mrb[0].mxu0
    %216 = vmatprep.mubr.f32.mxu0 0.0
    %217 = vmatmul.mubr.f32.gmra.mrb[0].mxu0 %v116
    %v218 = vpop.f32.mrb[0].mxu0
    %v219 = vadd.f32 0.0, %v218
    %v220 = vpop.f32.mrb[0].mxu0
    %221 = vdwg.mxu0
    %222 = vst [vmem:[#allocation3] sm:$0xff] %v184
    %223 = vst [vmem:[#allocation3 + $0x8] sm:$0xff] %v189
    %224 = vst [vmem:[#allocation3 + $0x10] sm:$0xff] %v194
    %225 = vst [vmem:[#allocation3 + $0x18] sm:$0xff] %v199
    %226 = vst [vmem:[#allocation3 + $0x20] sm:$0xff] %v204
    %227 = vst [vmem:[#allocation3 + $0x28] sm:$0xff] %v209
    %228 = vst [vmem:[#allocation3 + $0x30] sm:$0xff] %v214
    %229 = vst [vmem:[#allocation3 + $0x38] sm:$0xff] %v219
    %v230 = vld [vmem:[#allocation2] sm:$0xff]
    %v231 = vld [vmem:[#allocation3] sm:$0xff]
    %232 = vmatprep.subr.mxu0 0.0
    %233 = vmatpush1.msra.mxu0 %v93
    %234 = vmatprep.subr.mxu0 0.0
    %235 = vmatpush1.msra.mxu0 %v94
    %236 = vmatprep.subr.mxu0 0.0
    %237 = vmatpush1.msra.mxu0 %v95
    %238 = vmatprep.subr.mxu0 0.0
    %239 = vmatpush1.msra.mxu0 %v96
    %240 = vmatprep.subr.mxu0 0.0
    %241 = vmatpush1.msra.mxu0 %v97
    %242 = vmatprep.subr.mxu0 0.0
    %243 = vmatpush1.msra.mxu0 %v98
    %244 = vmatprep.subr.mxu0 0.0
    %245 = vmatpush1.msra.mxu0 %v99
    %246 = vmatprep.subr.mxu0 0.0
    %247 = vmatpush1.msra.mxu0 %v100
    %248 = vmatprep.subr.mxu0 0.0
    %249 = vmatpush1.msra.mxu0 %v101
    %250 = vmatprep.subr.mxu0 0.0
    %251 = vmatpush1.msra.mxu0 %v102
    %252 = vmatprep.subr.mxu0 0.0
    %253 = vmatpush1.msra.mxu0 %v103
    %254 = vmatprep.subr.mxu0 0.0
    %255 = vmatpush1.msra.mxu0 %v104
    %256 = vmatprep.subr.mxu0 0.0
    %257 = vmatpush1.msra.mxu0 %v105
    %258 = vmatprep.subr.mxu0 0.0
    %259 = vmatpush1.msra.mxu0 %v106
    %260 = vmatprep.subr.mxu0 0.0
    %261 = vmatpush1.msra.mxu0 %v107
    %262 = vmatprep.subr.mxu0 0.0
    %263 = vmatpush1.msra.mxu0 %v108
    %264 = vmatprep.subr.mxu0 0.0
    %265 = vmatpush1.msra.mxu0 0.0
    %266 = vmatprep.subr.mxu0 0.0
    %267 = vmatpush1.msra.mxu0 0.0
    %268 = vmatprep.subr.mxu0 0.0
    %269 = vmatpush1.msra.mxu0 0.0
    %270 = vmatprep.subr.mxu0 0.0
    %271 = vmatpush1.msra.mxu0 0.0
    %272 = vmatprep.subr.mxu0 0.0
    %273 = vmatpush1.msra.mxu0 0.0
    %274 = vmatprep.subr.mxu0 0.0
    %275 = vmatpush1.msra.mxu0 0.0
    %276 = vmatprep.subr.mxu0 0.0
    %277 = vmatpush1.msra.mxu0 0.0
    %278 = vmatprep.subr.mxu0 0.0
    %279 = vmatpush1.msra.mxu0 0.0
    %280 = vmatprep.subr.mxu0 0.0
    %281 = vmatpush1.msra.mxu0 0.0
    %282 = vmatprep.subr.mxu0 0.0
    %283 = vmatpush1.msra.mxu0 0.0
    %284 = vmatprep.subr.mxu0 0.0
    %285 = vmatpush1.msra.mxu0 0.0
    %286 = vmatprep.subr.mxu0 0.0
    %287 = vmatpush1.msra.mxu0 0.0
    %288 = vmatprep.subr.mxu0 0.0
    %289 = vmatpush1.msra.mxu0 0.0
    %290 = vmatprep.subr.mxu0 0.0
    %291 = vmatpush1.msra.mxu0 0.0
    %292 = vmatprep.subr.mxu0 0.0
    %293 = vmatpush1.msra.mxu0 0.0
    %294 = vmatprep.subr.mxu0 0.0
    %295 = vmatpush1.msra.mxu0 0.0
    %296 = vmatprep.mubr.f32.mxu0 0.0
    %297 = vmatmul.mubr.f32.gmra.mrb[0].mxu0 %v230
    %v298 = vpop.f32.mrb[0].mxu0
    %v299 = vadd.f32 %v231, %v298
    %v300 = vpop.f32.mrb[0].mxu0
    %301 = vdwg.mxu0
    %v302 = vmax.f32 %v299, 0.0
    %303 = vst [vmem:[#allocation12] sm:$0xff] %v302
    %s304 = scalar_lea.vmem [#allocation3], 8
    %v305 = vld [vmem:[%s304] sm:$0xff]
    %306 = vmatprep.subr.mxu0 0.0
    %307 = vmatpush1.msra.mxu0 %v93
    %308 = vmatprep.subr.mxu0 0.0
    %309 = vmatpush1.msra.mxu0 %v94
    %310 = vmatprep.subr.mxu0 0.0
    %311 = vmatpush1.msra.mxu0 %v95
    %312 = vmatprep.subr.mxu0 0.0
    %313 = vmatpush1.msra.mxu0 %v96
    %314 = vmatprep.subr.mxu0 0.0
    %315 = vmatpush1.msra.mxu0 %v97
    %316 = vmatprep.subr.mxu0 0.0
    %317 = vmatpush1.msra.mxu0 %v98
    %318 = vmatprep.subr.mxu0 0.0
    %319 = vmatpush1.msra.mxu0 %v99
    %320 = vmatprep.subr.mxu0 0.0
    %321 = vmatpush1.msra.mxu0 %v100
    %322 = vmatprep.subr.mxu0 0.0
    %323 = vmatpush1.msra.mxu0 %v101
    %324 = vmatprep.subr.mxu0 0.0
    %325 = vmatpush1.msra.mxu0 %v102
    %326 = vmatprep.subr.mxu0 0.0
    %327 = vmatpush1.msra.mxu0 %v103
    %328 = vmatprep.subr.mxu0 0.0
    %329 = vmatpush1.msra.mxu0 %v104
    %330 = vmatprep.subr.mxu0 0.0
    %331 = vmatpush1.msra.mxu0 %v105
    %332 = vmatprep.subr.mxu0 0.0
    %333 = vmatpush1.msra.mxu0 %v106
    %334 = vmatprep.subr.mxu0 0.0
    %335 = vmatpush1.msra.mxu0 %v107
    %336 = vmatprep.subr.mxu0 0.0
    %337 = vmatpush1.msra.mxu0 %v108
    %338 = vmatprep.subr.mxu0 0.0
    %339 = vmatpush1.msra.mxu0 0.0
    %340 = vmatprep.subr.mxu0 0.0
    %341 = vmatpush1.msra.mxu0 0.0
    %342 = vmatprep.subr.mxu0 0.0
    %343 = vmatpush1.msra.mxu0 0.0
    %344 = vmatprep.subr.mxu0 0.0
    %345 = vmatpush1.msra.mxu0 0.0
    %346 = vmatprep.subr.mxu0 0.0
    %347 = vmatpush1.msra.mxu0 0.0
    %348 = vmatprep.subr.mxu0 0.0
    %349 = vmatpush1.msra.mxu0 0.0
    %350 = vmatprep.subr.mxu0 0.0
    %351 = vmatpush1.msra.mxu0 0.0
    %352 = vmatprep.subr.mxu0 0.0
    %353 = vmatpush1.msra.mxu0 0.0
    %354 = vmatprep.subr.mxu0 0.0
    %355 = vmatpush1.msra.mxu0 0.0
    %356 = vmatprep.subr.mxu0 0.0
    %357 = vmatpush1.msra.mxu0 0.0
    %358 = vmatprep.subr.mxu0 0.0
    %359 = vmatpush1.msra.mxu0 0.0
    %360 = vmatprep.subr.mxu0 0.0
    %361 = vmatpush1.msra.mxu0 0.0
    %362 = vmatprep.subr.mxu0 0.0
    %363 = vmatpush1.msra.mxu0 0.0
    %364 = vmatprep.subr.mxu0 0.0
    %365 = vmatpush1.msra.mxu0 0.0
    %366 = vmatprep.subr.mxu0 0.0
    %367 = vmatpush1.msra.mxu0 0.0
    %368 = vmatprep.subr.mxu0 0.0
    %369 = vmatpush1.msra.mxu0 0.0
    %370 = vmatprep.mubr.f32.mxu0 0.0
    %371 = vmatmul.mubr.f32.gmra.mrb[0].mxu0 %v302
    %v372 = vpop.f32.mrb[0].mxu0
    %v373 = vadd.f32 %v305, %v372
    %v374 = vpop.f32.mrb[0].mxu0
    %375 = vdwg.mxu0
    %v376 = vmax.f32 %v373, 0.0
    %s377 = scalar_lea.vmem [#allocation12], 8
    %378 = vst [vmem:[%s377] sm:$0xff] %v376
    %s379 = scalar_lea.vmem [#allocation3], 16
    %v380 = vld [vmem:[%s379] sm:$0xff]
    %381 = vmatprep.subr.mxu0 0.0
    %382 = vmatpush1.msra.mxu0 %v93
    %383 = vmatprep.subr.mxu0 0.0
    %384 = vmatpush1.msra.mxu0 %v94
    %385 = vmatprep.subr.mxu0 0.0
    %386 = vmatpush1.msra.mxu0 %v95
    %387 = vmatprep.subr.mxu0 0.0
    %388 = vmatpush1.msra.mxu0 %v96
    %389 = vmatprep.subr.mxu0 0.0
    %390 = vmatpush1.msra.mxu0 %v97
    %391 = vmatprep.subr.mxu0 0.0
    %392 = vmatpush1.msra.mxu0 %v98
    %393 = vmatprep.subr.mxu0 0.0
    %394 = vmatpush1.msra.mxu0 %v99
    %395 = vmatprep.subr.mxu0 0.0
    %396 = vmatpush1.msra.mxu0 %v100
    %397 = vmatprep.subr.mxu0 0.0
    %398 = vmatpush1.msra.mxu0 %v101
    %399 = vmatprep.subr.mxu0 0.0
    %400 = vmatpush1.msra.mxu0 %v102
    %401 = vmatprep.subr.mxu0 0.0
    %402 = vmatpush1.msra.mxu0 %v103
    %403 = vmatprep.subr.mxu0 0.0
    %404 = vmatpush1.msra.mxu0 %v104
    %405 = vmatprep.subr.mxu0 0.0
    %406 = vmatpush1.msra.mxu0 %v105
    %407 = vmatprep.subr.mxu0 0.0
    %408 = vmatpush1.msra.mxu0 %v106
    %409 = vmatprep.subr.mxu0 0.0
    %410 = vmatpush1.msra.mxu0 %v107
    %411 = vmatprep.subr.mxu0 0.0
    %412 = vmatpush1.msra.mxu0 %v108
    %413 = vmatprep.subr.mxu0 0.0
    %414 = vmatpush1.msra.mxu0 0.0
    %415 = vmatprep.subr.mxu0 0.0
    %416 = vmatpush1.msra.mxu0 0.0
    %417 = vmatprep.subr.mxu0 0.0
    %418 = vmatpush1.msra.mxu0 0.0
    %419 = vmatprep.subr.mxu0 0.0
    %420 = vmatpush1.msra.mxu0 0.0
    %421 = vmatprep.subr.mxu0 0.0
    %422 = vmatpush1.msra.mxu0 0.0
    %423 = vmatprep.subr.mxu0 0.0
    %424 = vmatpush1.msra.mxu0 0.0
    %425 = vmatprep.subr.mxu0 0.0
    %426 = vmatpush1.msra.mxu0 0.0
    %427 = vmatprep.subr.mxu0 0.0
    %428 = vmatpush1.msra.mxu0 0.0
    %429 = vmatprep.subr.mxu0 0.0
    %430 = vmatpush1.msra.mxu0 0.0
    %431 = vmatprep.subr.mxu0 0.0
    %432 = vmatpush1.msra.mxu0 0.0
    %433 = vmatprep.subr.mxu0 0.0
    %434 = vmatpush1.msra.mxu0 0.0
    %435 = vmatprep.subr.mxu0 0.0
    %436 = vmatpush1.msra.mxu0 0.0
    %437 = vmatprep.subr.mxu0 0.0
    %438 = vmatpush1.msra.mxu0 0.0
    %439 = vmatprep.subr.mxu0 0.0
    %440 = vmatpush1.msra.mxu0 0.0
    %441 = vmatprep.subr.mxu0 0.0
    %442 = vmatpush1.msra.mxu0 0.0
    %443 = vmatprep.subr.mxu0 0.0
    %444 = vmatpush1.msra.mxu0 0.0
    %445 = vmatprep.mubr.f32.mxu0 0.0
    %446 = vmatmul.mubr.f32.gmra.mrb[0].mxu0 %v376
    %v447 = vpop.f32.mrb[0].mxu0
    %v448 = vadd.f32 %v380, %v447
    %v449 = vpop.f32.mrb[0].mxu0
    %450 = vdwg.mxu0
    %v451 = vmax.f32 %v448, 0.0
    %s452 = scalar_lea.vmem [#allocation12], 16
    %453 = vst [vmem:[%s452] sm:$0xff] %v451
    %s454 = scalar_lea.vmem [#allocation3], 24
    %v455 = vld [vmem:[%s454] sm:$0xff]
    %456 = vmatprep.subr.mxu0 0.0
    %457 = vmatpush1.msra.mxu0 %v93
    %458 = vmatprep.subr.mxu0 0.0
    %459 = vmatpush1.msra.mxu0 %v94
    %460 = vmatprep.subr.mxu0 0.0
    %461 = vmatpush1.msra.mxu0 %v95
    %462 = vmatprep.subr.mxu0 0.0
    %463 = vmatpush1.msra.mxu0 %v96
    %464 = vmatprep.subr.mxu0 0.0
    %465 = vmatpush1.msra.mxu0 %v97
    %466 = vmatprep.subr.mxu0 0.0
    %467 = vmatpush1.msra.mxu0 %v98
    %468 = vmatprep.subr.mxu0 0.0
    %469 = vmatpush1.msra.mxu0 %v99
    %470 = vmatprep.subr.mxu0 0.0
    %471 = vmatpush1.msra.mxu0 %v100
    %472 = vmatprep.subr.mxu0 0.0
    %473 = vmatpush1.msra.mxu0 %v101
    %474 = vmatprep.subr.mxu0 0.0
    %475 = vmatpush1.msra.mxu0 %v102
    %476 = vmatprep.subr.mxu0 0.0
    %477 = vmatpush1.msra.mxu0 %v103
    %478 = vmatprep.subr.mxu0 0.0
    %479 = vmatpush1.msra.mxu0 %v104
    %480 = vmatprep.subr.mxu0 0.0
    %481 = vmatpush1.msra.mxu0 %v105
    %482 = vmatprep.subr.mxu0 0.0
    %483 = vmatpush1.msra.mxu0 %v106
    %484 = vmatprep.subr.mxu0 0.0
    %485 = vmatpush1.msra.mxu0 %v107
    %486 = vmatprep.subr.mxu0 0.0
    %487 = vmatpush1.msra.mxu0 %v108
    %488 = vmatprep.subr.mxu0 0.0
    %489 = vmatpush1.msra.mxu0 0.0
    %490 = vmatprep.subr.mxu0 0.0
    %491 = vmatpush1.msra.mxu0 0.0
    %492 = vmatprep.subr.mxu0 0.0
    %493 = vmatpush1.msra.mxu0 0.0
    %494 = vmatprep.subr.mxu0 0.0
    %495 = vmatpush1.msra.mxu0 0.0
    %496 = vmatprep.subr.mxu0 0.0
    %497 = vmatpush1.msra.mxu0 0.0
    %498 = vmatprep.subr.mxu0 0.0
    %499 = vmatpush1.msra.mxu0 0.0
    %500 = vmatprep.subr.mxu0 0.0
    %501 = vmatpush1.msra.mxu0 0.0
    %502 = vmatprep.subr.mxu0 0.0
    %503 = vmatpush1.msra.mxu0 0.0
    %504 = vmatprep.subr.mxu0 0.0
    %505 = vmatpush1.msra.mxu0 0.0
    %506 = vmatprep.subr.mxu0 0.0
    %507 = vmatpush1.msra.mxu0 0.0
    %508 = vmatprep.subr.mxu0 0.0
    %509 = vmatpush1.msra.mxu0 0.0
    %510 = vmatprep.subr.mxu0 0.0
    %511 = vmatpush1.msra.mxu0 0.0
    %512 = vmatprep.subr.mxu0 0.0
    %513 = vmatpush1.msra.mxu0 0.0
    %514 = vmatprep.subr.mxu0 0.0
    %515 = vmatpush1.msra.mxu0 0.0
    %516 = vmatprep.subr.mxu0 0.0
    %517 = vmatpush1.msra.mxu0 0.0
    %518 = vmatprep.subr.mxu0 0.0
    %519 = vmatpush1.msra.mxu0 0.0
    %520 = vmatprep.mubr.f32.mxu0 0.0
    %521 = vmatmul.mubr.f32.gmra.mrb[0].mxu0 %v451
    %v522 = vpop.f32.mrb[0].mxu0
    %v523 = vadd.f32 %v455, %v522
    %v524 = vpop.f32.mrb[0].mxu0
    %525 = vdwg.mxu0
    %v526 = vmax.f32 %v523, 0.0
    %s527 = scalar_lea.vmem [#allocation12], 24
    %528 = vst [vmem:[%s527] sm:$0xff] %v526
    %s529 = scalar_lea.vmem [#allocation3], 32
    %v530 = vld [vmem:[%s529] sm:$0xff]
    %531 = vmatprep.subr.mxu0 0.0
    %532 = vmatpush1.msra.mxu0 %v93
    %533 = vmatprep.subr.mxu0 0.0
    %534 = vmatpush1.msra.mxu0 %v94
    %535 = vmatprep.subr.mxu0 0.0
    %536 = vmatpush1.msra.mxu0 %v95
    %537 = vmatprep.subr.mxu0 0.0
    %538 = vmatpush1.msra.mxu0 %v96
    %539 = vmatprep.subr.mxu0 0.0
    %540 = vmatpush1.msra.mxu0 %v97
    %541 = vmatprep.subr.mxu0 0.0
    %542 = vmatpush1.msra.mxu0 %v98
    %543 = vmatprep.subr.mxu0 0.0
    %544 = vmatpush1.msra.mxu0 %v99
    %545 = vmatprep.subr.mxu0 0.0
    %546 = vmatpush1.msra.mxu0 %v100
    %547 = vmatprep.subr.mxu0 0.0
    %548 = vmatpush1.msra.mxu0 %v101
    %549 = vmatprep.subr.mxu0 0.0
    %550 = vmatpush1.msra.mxu0 %v102
    %551 = vmatprep.subr.mxu0 0.0
    %552 = vmatpush1.msra.mxu0 %v103
    %553 = vmatprep.subr.mxu0 0.0
    %554 = vmatpush1.msra.mxu0 %v104
    %555 = vmatprep.subr.mxu0 0.0
    %556 = vmatpush1.msra.mxu0 %v105
    %557 = vmatprep.subr.mxu0 0.0
    %558 = vmatpush1.msra.mxu0 %v106
    %559 = vmatprep.subr.mxu0 0.0
    %560 = vmatpush1.msra.mxu0 %v107
    %561 = vmatprep.subr.mxu0 0.0
    %562 = vmatpush1.msra.mxu0 %v108
    %563 = vmatprep.subr.mxu0 0.0
    %564 = vmatpush1.msra.mxu0 0.0
    %565 = vmatprep.subr.mxu0 0.0
    %566 = vmatpush1.msra.mxu0 0.0
    %567 = vmatprep.subr.mxu0 0.0
    %568 = vmatpush1.msra.mxu0 0.0
    %569 = vmatprep.subr.mxu0 0.0
    %570 = vmatpush1.msra.mxu0 0.0
    %571 = vmatprep.subr.mxu0 0.0
    %572 = vmatpush1.msra.mxu0 0.0
    %573 = vmatprep.subr.mxu0 0.0
    %574 = vmatpush1.msra.mxu0 0.0
    %575 = vmatprep.subr.mxu0 0.0
    %576 = vmatpush1.msra.mxu0 0.0
    %577 = vmatprep.subr.mxu0 0.0
    %578 = vmatpush1.msra.mxu0 0.0
    %579 = vmatprep.subr.mxu0 0.0
    %580 = vmatpush1.msra.mxu0 0.0
    %581 = vmatprep.subr.mxu0 0.0
    %582 = vmatpush1.msra.mxu0 0.0
    %583 = vmatprep.subr.mxu0 0.0
    %584 = vmatpush1.msra.mxu0 0.0
    %585 = vmatprep.subr.mxu0 0.0
    %586 = vmatpush1.msra.mxu0 0.0
    %587 = vmatprep.subr.mxu0 0.0
    %588 = vmatpush1.msra.mxu0 0.0
    %589 = vmatprep.subr.mxu0 0.0
    %590 = vmatpush1.msra.mxu0 0.0
    %591 = vmatprep.subr.mxu0 0.0
    %592 = vmatpush1.msra.mxu0 0.0
    %593 = vmatprep.subr.mxu0 0.0
    %594 = vmatpush1.msra.mxu0 0.0
    %595 = vmatprep.mubr.f32.mxu0 0.0
    %596 = vmatmul.mubr.f32.gmra.mrb[0].mxu0 %v526
    %v597 = vpop.f32.mrb[0].mxu0
    %v598 = vadd.f32 %v530, %v597
    %v599 = vpop.f32.mrb[0].mxu0
    %600 = vdwg.mxu0
    %v601 = vmax.f32 %v598, 0.0
    %s602 = scalar_lea.vmem [#allocation12], 32
    %603 = vst [vmem:[%s602] sm:$0xff] %v601
    %s604 = scalar_lea.vmem [#allocation3], 40
    %v605 = vld [vmem:[%s604] sm:$0xff]
    %606 = vmatprep.subr.mxu0 0.0
    %607 = vmatpush1.msra.mxu0 %v93
    %608 = vmatprep.subr.mxu0 0.0
    %609 = vmatpush1.msra.mxu0 %v94
    %610 = vmatprep.subr.mxu0 0.0
    %611 = vmatpush1.msra.mxu0 %v95
    %612 = vmatprep.subr.mxu0 0.0
    %613 = vmatpush1.msra.mxu0 %v96
    %614 = vmatprep.subr.mxu0 0.0
    %615 = vmatpush1.msra.mxu0 %v97
    %616 = vmatprep.subr.mxu0 0.0
    %617 = vmatpush1.msra.mxu0 %v98
    %618 = vmatprep.subr.mxu0 0.0
    %619 = vmatpush1.msra.mxu0 %v99
    %620 = vmatprep.subr.mxu0 0.0
    %621 = vmatpush1.msra.mxu0 %v100
    %622 = vmatprep.subr.mxu0 0.0
    %623 = vmatpush1.msra.mxu0 %v101
    %624 = vmatprep.subr.mxu0 0.0
    %625 = vmatpush1.msra.mxu0 %v102
    %626 = vmatprep.subr.mxu0 0.0
    %627 = vmatpush1.msra.mxu0 %v103
    %628 = vmatprep.subr.mxu0 0.0
    %629 = vmatpush1.msra.mxu0 %v104
    %630 = vmatprep.subr.mxu0 0.0
    %631 = vmatpush1.msra.mxu0 %v105
    %632 = vmatprep.subr.mxu0 0.0
    %633 = vmatpush1.msra.mxu0 %v106
    %634 = vmatprep.subr.mxu0 0.0
    %635 = vmatpush1.msra.mxu0 %v107
    %636 = vmatprep.subr.mxu0 0.0
    %637 = vmatpush1.msra.mxu0 %v108
    %638 = vmatprep.subr.mxu0 0.0
    %639 = vmatpush1.msra.mxu0 0.0
    %640 = vmatprep.subr.mxu0 0.0
    %641 = vmatpush1.msra.mxu0 0.0
    %642 = vmatprep.subr.mxu0 0.0
    %643 = vmatpush1.msra.mxu0 0.0
    %644 = vmatprep.subr.mxu0 0.0
    %645 = vmatpush1.msra.mxu0 0.0
    %646 = vmatprep.subr.mxu0 0.0
    %647 = vmatpush1.msra.mxu0 0.0
    %648 = vmatprep.subr.mxu0 0.0
    %649 = vmatpush1.msra.mxu0 0.0
    %650 = vmatprep.subr.mxu0 0.0
    %651 = vmatpush1.msra.mxu0 0.0
    %652 = vmatprep.subr.mxu0 0.0
    %653 = vmatpush1.msra.mxu0 0.0
    %654 = vmatprep.subr.mxu0 0.0
    %655 = vmatpush1.msra.mxu0 0.0
    %656 = vmatprep.subr.mxu0 0.0
    %657 = vmatpush1.msra.mxu0 0.0
    %658 = vmatprep.subr.mxu0 0.0
    %659 = vmatpush1.msra.mxu0 0.0
    %660 = vmatprep.subr.mxu0 0.0
    %661 = vmatpush1.msra.mxu0 0.0
    %662 = vmatprep.subr.mxu0 0.0
    %663 = vmatpush1.msra.mxu0 0.0
    %664 = vmatprep.subr.mxu0 0.0
    %665 = vmatpush1.msra.mxu0 0.0
    %666 = vmatprep.subr.mxu0 0.0
    %667 = vmatpush1.msra.mxu0 0.0
    %668 = vmatprep.subr.mxu0 0.0
    %669 = vmatpush1.msra.mxu0 0.0
    %670 = vmatprep.mubr.f32.mxu0 0.0
    %671 = vmatmul.mubr.f32.gmra.mrb[0].mxu0 %v601
    %v672 = vpop.f32.mrb[0].mxu0
    %v673 = vadd.f32 %v605, %v672
    %v674 = vpop.f32.mrb[0].mxu0
    %675 = vdwg.mxu0
    %v676 = vmax.f32 %v673, 0.0
    %s677 = scalar_lea.vmem [#allocation12], 40
    %678 = vst [vmem:[%s677] sm:$0xff] %v676
    %s679 = scalar_lea.vmem [#allocation3], 48
    %v680 = vld [vmem:[%s679] sm:$0xff]
    %681 = vmatprep.subr.mxu0 0.0
    %682 = vmatpush1.msra.mxu0 %v93
    %683 = vmatprep.subr.mxu0 0.0
    %684 = vmatpush1.msra.mxu0 %v94
    %685 = vmatprep.subr.mxu0 0.0
    %686 = vmatpush1.msra.mxu0 %v95
    %687 = vmatprep.subr.mxu0 0.0
    %688 = vmatpush1.msra.mxu0 %v96
    %689 = vmatprep.subr.mxu0 0.0
    %690 = vmatpush1.msra.mxu0 %v97
    %691 = vmatprep.subr.mxu0 0.0
    %692 = vmatpush1.msra.mxu0 %v98
    %693 = vmatprep.subr.mxu0 0.0
    %694 = vmatpush1.msra.mxu0 %v99
    %695 = vmatprep.subr.mxu0 0.0
    %696 = vmatpush1.msra.mxu0 %v100
    %697 = vmatprep.subr.mxu0 0.0
    %698 = vmatpush1.msra.mxu0 %v101
    %699 = vmatprep.subr.mxu0 0.0
    %700 = vmatpush1.msra.mxu0 %v102
    %701 = vmatprep.subr.mxu0 0.0
    %702 = vmatpush1.msra.mxu0 %v103
    %703 = vmatprep.subr.mxu0 0.0
    %704 = vmatpush1.msra.mxu0 %v104
    %705 = vmatprep.subr.mxu0 0.0
    %706 = vmatpush1.msra.mxu0 %v105
    %707 = vmatprep.subr.mxu0 0.0
    %708 = vmatpush1.msra.mxu0 %v106
    %709 = vmatprep.subr.mxu0 0.0
    %710 = vmatpush1.msra.mxu0 %v107
    %711 = vmatprep.subr.mxu0 0.0
    %712 = vmatpush1.msra.mxu0 %v108
    %713 = vmatprep.subr.mxu0 0.0
    %714 = vmatpush1.msra.mxu0 0.0
    %715 = vmatprep.subr.mxu0 0.0
    %716 = vmatpush1.msra.mxu0 0.0
    %717 = vmatprep.subr.mxu0 0.0
    %718 = vmatpush1.msra.mxu0 0.0
    %719 = vmatprep.subr.mxu0 0.0
    %720 = vmatpush1.msra.mxu0 0.0
    %721 = vmatprep.subr.mxu0 0.0
    %722 = vmatpush1.msra.mxu0 0.0
    %723 = vmatprep.subr.mxu0 0.0
    %724 = vmatpush1.msra.mxu0 0.0
    %725 = vmatprep.subr.mxu0 0.0
    %726 = vmatpush1.msra.mxu0 0.0
    %727 = vmatprep.subr.mxu0 0.0
    %728 = vmatpush1.msra.mxu0 0.0
    %729 = vmatprep.subr.mxu0 0.0
    %730 = vmatpush1.msra.mxu0 0.0
    %731 = vmatprep.subr.mxu0 0.0
    %732 = vmatpush1.msra.mxu0 0.0
    %733 = vmatprep.subr.mxu0 0.0
    %734 = vmatpush1.msra.mxu0 0.0
    %735 = vmatprep.subr.mxu0 0.0
    %736 = vmatpush1.msra.mxu0 0.0
    %737 = vmatprep.subr.mxu0 0.0
    %738 = vmatpush1.msra.mxu0 0.0
    %739 = vmatprep.subr.mxu0 0.0
    %740 = vmatpush1.msra.mxu0 0.0
    %741 = vmatprep.subr.mxu0 0.0
    %742 = vmatpush1.msra.mxu0 0.0
    %743 = vmatprep.subr.mxu0 0.0
    %744 = vmatpush1.msra.mxu0 0.0
    %745 = vmatprep.mubr.f32.mxu0 0.0
    %746 = vmatmul.mubr.f32.gmra.mrb[0].mxu0 %v676
    %v747 = vpop.f32.mrb[0].mxu0
    %v748 = vadd.f32 %v680, %v747
    %v749 = vpop.f32.mrb[0].mxu0
    %750 = vdwg.mxu0
    %v751 = vmax.f32 %v748, 0.0
    %s752 = scalar_lea.vmem [#allocation12], 48
    %753 = vst [vmem:[%s752] sm:$0xff] %v751
    %s754 = scalar_lea.vmem [#allocation3], 56
    %v755 = vld [vmem:[%s754] sm:$0xff]
    %756 = vmatprep.subr.mxu0 0.0
    %757 = vmatpush1.msra.mxu0 %v93
    %758 = vmatprep.subr.mxu0 0.0
    %759 = vmatpush1.msra.mxu0 %v94
    %760 = vmatprep.subr.mxu0 0.0
    %761 = vmatpush1.msra.mxu0 %v95
    %762 = vmatprep.subr.mxu0 0.0
    %763 = vmatpush1.msra.mxu0 %v96
    %764 = vmatprep.subr.mxu0 0.0
    %765 = vmatpush1.msra.mxu0 %v97
    %766 = vmatprep.subr.mxu0 0.0
    %767 = vmatpush1.msra.mxu0 %v98
    %768 = vmatprep.subr.mxu0 0.0
    %769 = vmatpush1.msra.mxu0 %v99
    %770 = vmatprep.subr.mxu0 0.0
    %771 = vmatpush1.msra.mxu0 %v100
    %772 = vmatprep.subr.mxu0 0.0
    %773 = vmatpush1.msra.mxu0 %v101
    %774 = vmatprep.subr.mxu0 0.0
    %775 = vmatpush1.msra.mxu0 %v102
    %776 = vmatprep.subr.mxu0 0.0
    %777 = vmatpush1.msra.mxu0 %v103
    %778 = vmatprep.subr.mxu0 0.0
    %779 = vmatpush1.msra.mxu0 %v104
    %780 = vmatprep.subr.mxu0 0.0
    %781 = vmatpush1.msra.mxu0 %v105
    %782 = vmatprep.subr.mxu0 0.0
    %783 = vmatpush1.msra.mxu0 %v106
    %784 = vmatprep.subr.mxu0 0.0
    %785 = vmatpush1.msra.mxu0 %v107
    %786 = vmatprep.subr.mxu0 0.0
    %787 = vmatpush1.msra.mxu0 %v108
    %788 = vmatprep.subr.mxu0 0.0
    %789 = vmatpush1.msra.mxu0 0.0
    %790 = vmatprep.subr.mxu0 0.0
    %791 = vmatpush1.msra.mxu0 0.0
    %792 = vmatprep.subr.mxu0 0.0
    %793 = vmatpush1.msra.mxu0 0.0
    %794 = vmatprep.subr.mxu0 0.0
    %795 = vmatpush1.msra.mxu0 0.0
    %796 = vmatprep.subr.mxu0 0.0
    %797 = vmatpush1.msra.mxu0 0.0
    %798 = vmatprep.subr.mxu0 0.0
    %799 = vmatpush1.msra.mxu0 0.0
    %800 = vmatprep.subr.mxu0 0.0
    %801 = vmatpush1.msra.mxu0 0.0
    %802 = vmatprep.subr.mxu0 0.0
    %803 = vmatpush1.msra.mxu0 0.0
    %804 = vmatprep.subr.mxu0 0.0
    %805 = vmatpush1.msra.mxu0 0.0
    %806 = vmatprep.subr.mxu0 0.0
    %807 = vmatpush1.msra.mxu0 0.0
    %808 = vmatprep.subr.mxu0 0.0
    %809 = vmatpush1.msra.mxu0 0.0
    %810 = vmatprep.subr.mxu0 0.0
    %811 = vmatpush1.msra.mxu0 0.0
    %812 = vmatprep.subr.mxu0 0.0
    %813 = vmatpush1.msra.mxu0 0.0
    %814 = vmatprep.subr.mxu0 0.0
    %815 = vmatpush1.msra.mxu0 0.0
    %816 = vmatprep.subr.mxu0 0.0
    %817 = vmatpush1.msra.mxu0 0.0
    %818 = vmatprep.subr.mxu0 0.0
    %819 = vmatpush1.msra.mxu0 0.0
    %820 = vmatprep.mubr.f32.mxu0 0.0
    %821 = vmatmul.mubr.f32.gmra.mrb[0].mxu0 %v751
    %v822 = vpop.f32.mrb[0].mxu0
    %v823 = vadd.f32 %v755, %v822
    %v824 = vpop.f32.mrb[0].mxu0
    %825 = vdwg.mxu0
    %v826 = vmax.f32 %v823, 0.0
    %s827 = scalar_lea.vmem [#allocation12], 56
    %828 = vst [vmem:[%s827] sm:$0xff] %v826
    %829 = vst [vmem:[#allocation2] sm:$0xff] %v826
    // Predicated region
    $region38: #{tpu_custom_call.1} parent=1 // pred_check
      _
    $region39: #{tpu_custom_call.1} parent=1 // pred_check_branch
      %831 = sbr.rel (0) target = $region41
    $region40: #{tpu_custom_call.1} parent=1 // pred_region
      %s833 = ssub.s32 1024, 1024
      %834 = vsyncadd [#allocation6], %s833
      %s835 = sshll.u32 [#allocation12], 4
      %s836 = int_to_ptr.vmem [resolvable:$true] %s835
      %841 = dma.vmem_to_hbm [thread:$0]  %s836, 1024, %s4, [#allocation6], 128, 128, 8
    $region41: #{tpu_custom_call.1} parent=1 // pred_fallthru
      _
    // Predicated region
    $region42: #{tpu_custom_call.1} parent=1 // pred_check
      _
    $region43: #{tpu_custom_call.1} parent=1 // pred_check_branch
      %843 = sbr.rel (0) target = $region45
    $region44: #{tpu_custom_call.1} parent=1 // pred_region
      %844 = dma.done [#allocation6], 1024
    $region45: #{tpu_custom_call.1} parent=1 // pred_fallthru
      _
    %845 = vsyncpa [#allocation5], 1
    %846 = vsyncpa [#allocation8], 1
    %847 = vsyncpa [#allocation11], 1
    %848 = vsyncpa [#allocation6], 1

</llo_original>
